<compile_context>
chip_gen: v6e
topology: v6e:2x2x1
jax: 0.10.0
libtpu: 0.0.40
codegen_flags: <defaults>
</compile_context>

<pallas_src>
import functools

import jax
import jax.numpy as jnp
from jax.experimental import pallas as pl
from jax.experimental.pallas import tpu as pltpu


def elman_kernel(ids_ref, wxe_hbm, wh_t_ref, wp_t_ref, b_ref,
                 out_ref, xrows, dma_sems, *, valid_v):
    n_steps = out_ref.shape[0]           # T - 1 (static)
    H = wh_t_ref.shape[0]

    # ---- One-hot gather: DMA only the needed rows of W_xe^T from HBM. ------
    copies = []
    for i in range(n_steps):             # static trip count
        cp = pltpu.make_async_copy(
            wxe_hbm.at[pl.ds(ids_ref[i], 1)],   # (1, H) row word_ids[i]
            xrows.at[pl.ds(i, 1)],
            dma_sems.at[i])
        cp.start()
        copies.append(cp)

    # Hoisting the (H, H) recurrence weight is fine at H = 32 (<= 128); at
    # larger H keep the per-step wh_t_ref[...] read instead (vreg pressure).
    wh_t = wh_t_ref[...]                  # (H, H)
    bias = b_ref[...]                     # (1, H)

    # ---- Serial Elman recurrence: h lives in vregs, fully unrolled. --------
    h = jnp.zeros((1, H), jnp.float32)
    hs = []
    for i in range(n_steps):
        copies[i].wait()                  # row i ready; later rows still in flight
        pre = xrows[i:i + 1, :] + bias + jnp.dot(
            h, wh_t, preferred_element_type=jnp.float32)
        h = jax.nn.sigmoid(pre)           # EUP path
        hs.append(h)
    h_all = jnp.concatenate(hs, axis=0)   # (T-1, H), no scratch round trip

    # ---- Batched output projection + masked softmax + one dense store. -----
    s = jnp.dot(h_all, wp_t_ref[...],
                preferred_element_type=jnp.float32)          # (T-1, Vp)
    s = s - jnp.max(s, axis=-1, keepdims=True)               # shift-invariant
    e = jnp.exp(s)
    lane = jax.lax.broadcasted_iota(jnp.int32, e.shape, dimension=1)
    e = jnp.where(lane < valid_v, e, 0.0)                    # drop vocab padding
    out_ref[...] = e * pl.reciprocal(jnp.sum(e, axis=-1, keepdims=True))


def elman_forward(sent, W_e, W_x, W_h, W_p, b):
    """sent: (T, V) f32 one-hot rows.  Returns (T-1, V) softmax predictions."""
    T, V = sent.shape
    H = W_h.shape[0]
    n_steps = T - 1
    v_pad = ((V + 127) // 128) * 128      # lane-dense output width (>= 128)

    # One-hot assumption (as in the original module's usage): embedding +
    # input projection of one-hot sent[i] is exactly one row of (W_x @ W_e)^T.
    # TODO(synk): for dense (non one-hot) sentences fall back to a batched
    # (T-1, V) @ (V, H) GEMM instead of the gather.
    word_ids = jnp.argmax(sent, axis=-1).astype(jnp.int32)   # (T,)

    wxe_t = (W_x @ W_e).T.astype(jnp.float32)                # (V, H)
    wh_t = W_h.T.astype(jnp.float32)                         # (H, H)
    wp_t = jnp.zeros((H, v_pad), jnp.float32).at[:, :V].set(
        W_p.T.astype(jnp.float32))                           # (H, Vp), zero-padded
    b2 = b.reshape(1, H).astype(jnp.float32)                 # (1, H)

    out_padded = pl.pallas_call(
        functools.partial(elman_kernel, valid_v=V),
        out_shape=jax.ShapeDtypeStruct((n_steps, v_pad), jnp.float32),
        in_specs=[
            pl.BlockSpec(memory_space=pltpu.MemorySpace.SMEM),   # word ids
            pl.BlockSpec(memory_space=pl.ANY),                   # W_xe^T in HBM (gathered)
            pl.BlockSpec(memory_space=pltpu.MemorySpace.VMEM),   # W_h^T
            pl.BlockSpec(memory_space=pltpu.MemorySpace.VMEM),   # W_p^T (vocab-padded)
            pl.BlockSpec(memory_space=pltpu.MemorySpace.VMEM),   # bias
        ],
        out_specs=pl.BlockSpec(memory_space=pltpu.MemorySpace.VMEM),
        scratch_shapes=[
            pltpu.VMEM((n_steps, H), jnp.float32),      # gathered x rows
            pltpu.SemaphoreType.DMA((n_steps,)),        # one sem per row DMA
        ],
    )(word_ids, wxe_t, wh_t, wp_t, b2)
    return out_padded[:, :V]


def elman_reference(sent, W_e, W_x, W_h, W_p, b):
    """Pure-JAX transcription of the PyTorch forward (ground truth)."""
    T, V = sent.shape
    H = W_h.shape[0]
    h = jnp.zeros((H,), jnp.float32)
    outs = []
    for i in range(T - 1):
        e = W_e @ sent[i]
        h = jax.nn.sigmoid(W_x @ e + W_h @ h + b)
        outs.append(jax.nn.softmax(W_p @ h, axis=0))
    return jnp.stack(outs, axis=0)


if __name__ == "__main__":
    # Small shapes consistent with the module's forward.
    embedding_dim = 8
    vocab_size = 16
    hidden_state_dim = 32
    seq_len = 8

    key = jax.random.PRNGKey(0)
    k_we, k_wx, k_wh, k_wp, k_b, k_s = jax.random.split(key, 6)

    # torch.rand -> uniform [0, 1)
    W_e = jax.random.uniform(k_we, (embedding_dim, vocab_size), jnp.float32)
    W_x = jax.random.uniform(k_wx, (hidden_state_dim, embedding_dim), jnp.float32)
    W_h = jax.random.uniform(k_wh, (hidden_state_dim, hidden_state_dim), jnp.float32)
    W_p = jax.random.uniform(k_wp, (vocab_size, hidden_state_dim), jnp.float32)
    b = jax.random.uniform(k_b, (hidden_state_dim,), jnp.float32)

    # One-hot "sentence" of seq_len words over the vocab.
    word_ids = jax.random.randint(k_s, (seq_len,), 0, vocab_size)
    sent = jax.nn.one_hot(word_ids, vocab_size, dtype=jnp.float32)

    out = elman_forward(sent, W_e, W_x, W_h, W_p, b)
    out = jax.block_until_ready(out)

    ref = elman_reference(sent, W_e, W_x, W_h, W_p, b)
    assert out.shape == (seq_len - 1, vocab_size)
    assert jnp.allclose(out, ref, atol=1e-5, rtol=1e-5)

    print("KERNEL_OK")
</pallas_src>

<mosaic_0001>
module attributes {stable_mosaic.version = 11 : i64} {
  func.func @elman_kernel(%arg0: memref<8xi32, #tpu.memory_space<smem>>, %arg1: memref<16x32xf32, #tpu.memory_space<any>>, %arg2: memref<32x32xf32, #tpu.memory_space<vmem>>, %arg3: memref<32x128xf32, #tpu.memory_space<vmem>>, %arg4: memref<1x32xf32, #tpu.memory_space<vmem>>, %arg5: memref<7x128xf32, #tpu.memory_space<vmem>>, %arg6: memref<7x32xf32, #tpu.memory_space<vmem>>, %arg7: memref<7x!tpu.dma_semaphore, #tpu.memory_space<semaphore_mem>>) attributes {dimension_semantics = [], scalar_prefetch = 0 : i64, scratch_operands = 2 : i64, tpu.core_type = #tpu.core_type<tc>} {
    %c0 = arith.constant 0 : index
    %0 = memref.load %arg0[%c0] : memref<8xi32, #tpu.memory_space<smem>>
    %c0_i32 = arith.constant 0 : i32
    %c0_i32_0 = arith.constant 0 : i32
    %1 = tpu.memref_slice %arg1[%0, %c0_i32_0] : memref<16x32xf32, #tpu.memory_space<any>> -> memref<1x32xf32, #tpu.memory_space<any>>
    %c0_i32_1 = arith.constant 0 : i32
    %c0_i32_2 = arith.constant 0 : i32
    %2 = tpu.memref_slice %arg6[%c0_i32_1, %c0_i32_2] : memref<7x32xf32, #tpu.memory_space<vmem>> -> memref<1x32xf32, #tpu.memory_space<vmem>>
    %3 = tpu.memref_slice %arg7[%c0_i32] : memref<7x!tpu.dma_semaphore, #tpu.memory_space<semaphore_mem>> -> memref<1x!tpu.dma_semaphore, #tpu.memory_space<semaphore_mem>>
    %4 = tpu.memref_squeeze %3 : memref<1x!tpu.dma_semaphore, #tpu.memory_space<semaphore_mem>> -> memref<!tpu.dma_semaphore, #tpu.memory_space<semaphore_mem>>
    tpu.enqueue_dma source(%1 : memref<1x32xf32, #tpu.memory_space<any>>) target(%2 : memref<1x32xf32, #tpu.memory_space<vmem>>) target_semaphore(%4 : memref<!tpu.dma_semaphore, #tpu.memory_space<semaphore_mem>>)
    %c1 = arith.constant 1 : index
    %5 = memref.load %arg0[%c1] : memref<8xi32, #tpu.memory_space<smem>>
    %c1_i32 = arith.constant 1 : i32
    %c0_i32_3 = arith.constant 0 : i32
    %6 = tpu.memref_slice %arg1[%5, %c0_i32_3] : memref<16x32xf32, #tpu.memory_space<any>> -> memref<1x32xf32, #tpu.memory_space<any>>
    %c1_i32_4 = arith.constant 1 : i32
    %c0_i32_5 = arith.constant 0 : i32
    %7 = tpu.memref_slice %arg6[%c1_i32_4, %c0_i32_5] : memref<7x32xf32, #tpu.memory_space<vmem>> -> memref<1x32xf32, #tpu.memory_space<vmem>>
    %8 = tpu.memref_slice %arg7[%c1_i32] : memref<7x!tpu.dma_semaphore, #tpu.memory_space<semaphore_mem>> -> memref<1x!tpu.dma_semaphore, #tpu.memory_space<semaphore_mem>>
    %9 = tpu.memref_squeeze %8 : memref<1x!tpu.dma_semaphore, #tpu.memory_space<semaphore_mem>> -> memref<!tpu.dma_semaphore, #tpu.memory_space<semaphore_mem>>
    tpu.enqueue_dma source(%6 : memref<1x32xf32, #tpu.memory_space<any>>) target(%7 : memref<1x32xf32, #tpu.memory_space<vmem>>) target_semaphore(%9 : memref<!tpu.dma_semaphore, #tpu.memory_space<semaphore_mem>>)
    %c2 = arith.constant 2 : index
    %10 = memref.load %arg0[%c2] : memref<8xi32, #tpu.memory_space<smem>>
    %c2_i32 = arith.constant 2 : i32
    %c0_i32_6 = arith.constant 0 : i32
    %11 = tpu.memref_slice %arg1[%10, %c0_i32_6] : memref<16x32xf32, #tpu.memory_space<any>> -> memref<1x32xf32, #tpu.memory_space<any>>
    %c2_i32_7 = arith.constant 2 : i32
    %c0_i32_8 = arith.constant 0 : i32
    %12 = tpu.memref_slice %arg6[%c2_i32_7, %c0_i32_8] : memref<7x32xf32, #tpu.memory_space<vmem>> -> memref<1x32xf32, #tpu.memory_space<vmem>>
    %13 = tpu.memref_slice %arg7[%c2_i32] : memref<7x!tpu.dma_semaphore, #tpu.memory_space<semaphore_mem>> -> memref<1x!tpu.dma_semaphore, #tpu.memory_space<semaphore_mem>>
    %14 = tpu.memref_squeeze %13 : memref<1x!tpu.dma_semaphore, #tpu.memory_space<semaphore_mem>> -> memref<!tpu.dma_semaphore, #tpu.memory_space<semaphore_mem>>
    tpu.enqueue_dma source(%11 : memref<1x32xf32, #tpu.memory_space<any>>) target(%12 : memref<1x32xf32, #tpu.memory_space<vmem>>) target_semaphore(%14 : memref<!tpu.dma_semaphore, #tpu.memory_space<semaphore_mem>>)
    %c3 = arith.constant 3 : index
    %15 = memref.load %arg0[%c3] : memref<8xi32, #tpu.memory_space<smem>>
    %c3_i32 = arith.constant 3 : i32
    %c0_i32_9 = arith.constant 0 : i32
    %16 = tpu.memref_slice %arg1[%15, %c0_i32_9] : memref<16x32xf32, #tpu.memory_space<any>> -> memref<1x32xf32, #tpu.memory_space<any>>
    %c3_i32_10 = arith.constant 3 : i32
    %c0_i32_11 = arith.constant 0 : i32
    %17 = tpu.memref_slice %arg6[%c3_i32_10, %c0_i32_11] : memref<7x32xf32, #tpu.memory_space<vmem>> -> memref<1x32xf32, #tpu.memory_space<vmem>>
    %18 = tpu.memref_slice %arg7[%c3_i32] : memref<7x!tpu.dma_semaphore, #tpu.memory_space<semaphore_mem>> -> memref<1x!tpu.dma_semaphore, #tpu.memory_space<semaphore_mem>>
    %19 = tpu.memref_squeeze %18 : memref<1x!tpu.dma_semaphore, #tpu.memory_space<semaphore_mem>> -> memref<!tpu.dma_semaphore, #tpu.memory_space<semaphore_mem>>
    tpu.enqueue_dma source(%16 : memref<1x32xf32, #tpu.memory_space<any>>) target(%17 : memref<1x32xf32, #tpu.memory_space<vmem>>) target_semaphore(%19 : memref<!tpu.dma_semaphore, #tpu.memory_space<semaphore_mem>>)
    %c4 = arith.constant 4 : index
    %20 = memref.load %arg0[%c4] : memref<8xi32, #tpu.memory_space<smem>>
    %c4_i32 = arith.constant 4 : i32
    %c0_i32_12 = arith.constant 0 : i32
    %21 = tpu.memref_slice %arg1[%20, %c0_i32_12] : memref<16x32xf32, #tpu.memory_space<any>> -> memref<1x32xf32, #tpu.memory_space<any>>
    %c4_i32_13 = arith.constant 4 : i32
    %c0_i32_14 = arith.constant 0 : i32
    %22 = tpu.memref_slice %arg6[%c4_i32_13, %c0_i32_14] : memref<7x32xf32, #tpu.memory_space<vmem>> -> memref<1x32xf32, #tpu.memory_space<vmem>>
    %23 = tpu.memref_slice %arg7[%c4_i32] : memref<7x!tpu.dma_semaphore, #tpu.memory_space<semaphore_mem>> -> memref<1x!tpu.dma_semaphore, #tpu.memory_space<semaphore_mem>>
    %24 = tpu.memref_squeeze %23 : memref<1x!tpu.dma_semaphore, #tpu.memory_space<semaphore_mem>> -> memref<!tpu.dma_semaphore, #tpu.memory_space<semaphore_mem>>
    tpu.enqueue_dma source(%21 : memref<1x32xf32, #tpu.memory_space<any>>) target(%22 : memref<1x32xf32, #tpu.memory_space<vmem>>) target_semaphore(%24 : memref<!tpu.dma_semaphore, #tpu.memory_space<semaphore_mem>>)
    %c5 = arith.constant 5 : index
    %25 = memref.load %arg0[%c5] : memref<8xi32, #tpu.memory_space<smem>>
    %c5_i32 = arith.constant 5 : i32
    %c0_i32_15 = arith.constant 0 : i32
    %26 = tpu.memref_slice %arg1[%25, %c0_i32_15] : memref<16x32xf32, #tpu.memory_space<any>> -> memref<1x32xf32, #tpu.memory_space<any>>
    %c5_i32_16 = arith.constant 5 : i32
    %c0_i32_17 = arith.constant 0 : i32
    %27 = tpu.memref_slice %arg6[%c5_i32_16, %c0_i32_17] : memref<7x32xf32, #tpu.memory_space<vmem>> -> memref<1x32xf32, #tpu.memory_space<vmem>>
    %28 = tpu.memref_slice %arg7[%c5_i32] : memref<7x!tpu.dma_semaphore, #tpu.memory_space<semaphore_mem>> -> memref<1x!tpu.dma_semaphore, #tpu.memory_space<semaphore_mem>>
    %29 = tpu.memref_squeeze %28 : memref<1x!tpu.dma_semaphore, #tpu.memory_space<semaphore_mem>> -> memref<!tpu.dma_semaphore, #tpu.memory_space<semaphore_mem>>
    tpu.enqueue_dma source(%26 : memref<1x32xf32, #tpu.memory_space<any>>) target(%27 : memref<1x32xf32, #tpu.memory_space<vmem>>) target_semaphore(%29 : memref<!tpu.dma_semaphore, #tpu.memory_space<semaphore_mem>>)
    %c6 = arith.constant 6 : index
    %30 = memref.load %arg0[%c6] : memref<8xi32, #tpu.memory_space<smem>>
    %c6_i32 = arith.constant 6 : i32
    %c0_i32_18 = arith.constant 0 : i32
    %31 = tpu.memref_slice %arg1[%30, %c0_i32_18] : memref<16x32xf32, #tpu.memory_space<any>> -> memref<1x32xf32, #tpu.memory_space<any>>
    %c6_i32_19 = arith.constant 6 : i32
    %c0_i32_20 = arith.constant 0 : i32
    %32 = tpu.memref_slice %arg6[%c6_i32_19, %c0_i32_20] : memref<7x32xf32, #tpu.memory_space<vmem>> -> memref<1x32xf32, #tpu.memory_space<vmem>>
    %33 = tpu.memref_slice %arg7[%c6_i32] : memref<7x!tpu.dma_semaphore, #tpu.memory_space<semaphore_mem>> -> memref<1x!tpu.dma_semaphore, #tpu.memory_space<semaphore_mem>>
    %34 = tpu.memref_squeeze %33 : memref<1x!tpu.dma_semaphore, #tpu.memory_space<semaphore_mem>> -> memref<!tpu.dma_semaphore, #tpu.memory_space<semaphore_mem>>
    tpu.enqueue_dma source(%31 : memref<1x32xf32, #tpu.memory_space<any>>) target(%32 : memref<1x32xf32, #tpu.memory_space<vmem>>) target_semaphore(%34 : memref<!tpu.dma_semaphore, #tpu.memory_space<semaphore_mem>>)
    %c0_21 = arith.constant 0 : index
    %c0_22 = arith.constant 0 : index
    %35 = vector.load %arg2[%c0_21, %c0_22] : memref<32x32xf32, #tpu.memory_space<vmem>>, vector<32x32xf32>
    %c0_23 = arith.constant 0 : index
    %c0_24 = arith.constant 0 : index
    %36 = vector.load %arg4[%c0_23, %c0_24] : memref<1x32xf32, #tpu.memory_space<vmem>>, vector<1x32xf32>
    %cst = arith.constant 0.000000e+00 : f32
    %37 = vector.broadcast %cst : f32 to vector<1x32xf32>
    %c0_i32_25 = arith.constant 0 : i32
    %c0_i32_26 = arith.constant 0 : i32
    %38 = tpu.memref_slice %arg1[%0, %c0_i32_26] : memref<16x32xf32, #tpu.memory_space<any>> -> memref<1x32xf32, #tpu.memory_space<any>>
    %c0_i32_27 = arith.constant 0 : i32
    %c0_i32_28 = arith.constant 0 : i32
    %39 = tpu.memref_slice %arg6[%c0_i32_27, %c0_i32_28] : memref<7x32xf32, #tpu.memory_space<vmem>> -> memref<1x32xf32, #tpu.memory_space<vmem>>
    %40 = tpu.memref_slice %arg7[%c0_i32_25] : memref<7x!tpu.dma_semaphore, #tpu.memory_space<semaphore_mem>> -> memref<1x!tpu.dma_semaphore, #tpu.memory_space<semaphore_mem>>
    %41 = tpu.memref_squeeze %40 : memref<1x!tpu.dma_semaphore, #tpu.memory_space<semaphore_mem>> -> memref<!tpu.dma_semaphore, #tpu.memory_space<semaphore_mem>>
    tpu.wait_dma2 semaphore(%41 : memref<!tpu.dma_semaphore, #tpu.memory_space<semaphore_mem>>) src(%38 : memref<1x32xf32, #tpu.memory_space<any>>) dst(%39 : memref<1x32xf32, #tpu.memory_space<vmem>>)
    %c0_29 = arith.constant 0 : index
    %c0_30 = arith.constant 0 : index
    %42 = vector.load %arg6[%c0_29, %c0_30] : memref<7x32xf32, #tpu.memory_space<vmem>>, vector<1x32xf32>
    %43 = arith.addf %42, %36 : vector<1x32xf32>
    %cst_31 = arith.constant dense<0.000000e+00> : vector<1x32xf32>
    %44 = tpu.matmul %37, %35, %cst_31 {dimension_numbers = #tpu.dot_dimension_numbers<[1], [0], [0], [1], [0, 0, 1, 1], [], []>} : vector<1x32xf32>, vector<32x32xf32>, vector<1x32xf32> -> vector<1x32xf32>
    %45 = arith.addf %43, %44 : vector<1x32xf32>
    %46 = arith.negf %45 : vector<1x32xf32>
    %47 = math.exp %46 : vector<1x32xf32>
    %cst_32 = arith.constant 1.000000e+00 : f32
    %48 = vector.broadcast %cst_32 : f32 to vector<1x32xf32>
    %49 = arith.addf %48, %47 : vector<1x32xf32>
    %50 = arith.divf %48, %49 : vector<1x32xf32>
    %c1_i32_33 = arith.constant 1 : i32
    %c0_i32_34 = arith.constant 0 : i32
    %51 = tpu.memref_slice %arg1[%5, %c0_i32_34] : memref<16x32xf32, #tpu.memory_space<any>> -> memref<1x32xf32, #tpu.memory_space<any>>
    %c1_i32_35 = arith.constant 1 : i32
    %c0_i32_36 = arith.constant 0 : i32
    %52 = tpu.memref_slice %arg6[%c1_i32_35, %c0_i32_36] : memref<7x32xf32, #tpu.memory_space<vmem>> -> memref<1x32xf32, #tpu.memory_space<vmem>>
    %53 = tpu.memref_slice %arg7[%c1_i32_33] : memref<7x!tpu.dma_semaphore, #tpu.memory_space<semaphore_mem>> -> memref<1x!tpu.dma_semaphore, #tpu.memory_space<semaphore_mem>>
    %54 = tpu.memref_squeeze %53 : memref<1x!tpu.dma_semaphore, #tpu.memory_space<semaphore_mem>> -> memref<!tpu.dma_semaphore, #tpu.memory_space<semaphore_mem>>
    tpu.wait_dma2 semaphore(%54 : memref<!tpu.dma_semaphore, #tpu.memory_space<semaphore_mem>>) src(%51 : memref<1x32xf32, #tpu.memory_space<any>>) dst(%52 : memref<1x32xf32, #tpu.memory_space<vmem>>)
    %c1_37 = arith.constant 1 : index
    %c0_38 = arith.constant 0 : index
    %55 = vector.load %arg6[%c1_37, %c0_38] : memref<7x32xf32, #tpu.memory_space<vmem>>, vector<1x32xf32>
    %56 = arith.addf %55, %36 : vector<1x32xf32>
    %cst_39 = arith.constant dense<0.000000e+00> : vector<1x32xf32>
    %57 = tpu.matmul %50, %35, %cst_39 {dimension_numbers = #tpu.dot_dimension_numbers<[1], [0], [0], [1], [0, 0, 1, 1], [], []>} : vector<1x32xf32>, vector<32x32xf32>, vector<1x32xf32> -> vector<1x32xf32>
    %58 = arith.addf %56, %57 : vector<1x32xf32>
    %59 = arith.negf %58 : vector<1x32xf32>
    %60 = math.exp %59 : vector<1x32xf32>
    %cst_40 = arith.constant 1.000000e+00 : f32
    %61 = vector.broadcast %cst_40 : f32 to vector<1x32xf32>
    %62 = arith.addf %61, %60 : vector<1x32xf32>
    %63 = arith.divf %61, %62 : vector<1x32xf32>
    %c2_i32_41 = arith.constant 2 : i32
    %c0_i32_42 = arith.constant 0 : i32
    %64 = tpu.memref_slice %arg1[%10, %c0_i32_42] : memref<16x32xf32, #tpu.memory_space<any>> -> memref<1x32xf32, #tpu.memory_space<any>>
    %c2_i32_43 = arith.constant 2 : i32
    %c0_i32_44 = arith.constant 0 : i32
    %65 = tpu.memref_slice %arg6[%c2_i32_43, %c0_i32_44] : memref<7x32xf32, #tpu.memory_space<vmem>> -> memref<1x32xf32, #tpu.memory_space<vmem>>
    %66 = tpu.memref_slice %arg7[%c2_i32_41] : memref<7x!tpu.dma_semaphore, #tpu.memory_space<semaphore_mem>> -> memref<1x!tpu.dma_semaphore, #tpu.memory_space<semaphore_mem>>
    %67 = tpu.memref_squeeze %66 : memref<1x!tpu.dma_semaphore, #tpu.memory_space<semaphore_mem>> -> memref<!tpu.dma_semaphore, #tpu.memory_space<semaphore_mem>>
    tpu.wait_dma2 semaphore(%67 : memref<!tpu.dma_semaphore, #tpu.memory_space<semaphore_mem>>) src(%64 : memref<1x32xf32, #tpu.memory_space<any>>) dst(%65 : memref<1x32xf32, #tpu.memory_space<vmem>>)
    %c2_45 = arith.constant 2 : index
    %c0_46 = arith.constant 0 : index
    %68 = vector.load %arg6[%c2_45, %c0_46] : memref<7x32xf32, #tpu.memory_space<vmem>>, vector<1x32xf32>
    %69 = arith.addf %68, %36 : vector<1x32xf32>
    %cst_47 = arith.constant dense<0.000000e+00> : vector<1x32xf32>
    %70 = tpu.matmul %63, %35, %cst_47 {dimension_numbers = #tpu.dot_dimension_numbers<[1], [0], [0], [1], [0, 0, 1, 1], [], []>} : vector<1x32xf32>, vector<32x32xf32>, vector<1x32xf32> -> vector<1x32xf32>
    %71 = arith.addf %69, %70 : vector<1x32xf32>
    %72 = arith.negf %71 : vector<1x32xf32>
    %73 = math.exp %72 : vector<1x32xf32>
    %cst_48 = arith.constant 1.000000e+00 : f32
    %74 = vector.broadcast %cst_48 : f32 to vector<1x32xf32>
    %75 = arith.addf %74, %73 : vector<1x32xf32>
    %76 = arith.divf %74, %75 : vector<1x32xf32>
    %c3_i32_49 = arith.constant 3 : i32
    %c0_i32_50 = arith.constant 0 : i32
    %77 = tpu.memref_slice %arg1[%15, %c0_i32_50] : memref<16x32xf32, #tpu.memory_space<any>> -> memref<1x32xf32, #tpu.memory_space<any>>
    %c3_i32_51 = arith.constant 3 : i32
    %c0_i32_52 = arith.constant 0 : i32
    %78 = tpu.memref_slice %arg6[%c3_i32_51, %c0_i32_52] : memref<7x32xf32, #tpu.memory_space<vmem>> -> memref<1x32xf32, #tpu.memory_space<vmem>>
    %79 = tpu.memref_slice %arg7[%c3_i32_49] : memref<7x!tpu.dma_semaphore, #tpu.memory_space<semaphore_mem>> -> memref<1x!tpu.dma_semaphore, #tpu.memory_space<semaphore_mem>>
    %80 = tpu.memref_squeeze %79 : memref<1x!tpu.dma_semaphore, #tpu.memory_space<semaphore_mem>> -> memref<!tpu.dma_semaphore, #tpu.memory_space<semaphore_mem>>
    tpu.wait_dma2 semaphore(%80 : memref<!tpu.dma_semaphore, #tpu.memory_space<semaphore_mem>>) src(%77 : memref<1x32xf32, #tpu.memory_space<any>>) dst(%78 : memref<1x32xf32, #tpu.memory_space<vmem>>)
    %c3_53 = arith.constant 3 : index
    %c0_54 = arith.constant 0 : index
    %81 = vector.load %arg6[%c3_53, %c0_54] : memref<7x32xf32, #tpu.memory_space<vmem>>, vector<1x32xf32>
    %82 = arith.addf %81, %36 : vector<1x32xf32>
    %cst_55 = arith.constant dense<0.000000e+00> : vector<1x32xf32>
    %83 = tpu.matmul %76, %35, %cst_55 {dimension_numbers = #tpu.dot_dimension_numbers<[1], [0], [0], [1], [0, 0, 1, 1], [], []>} : vector<1x32xf32>, vector<32x32xf32>, vector<1x32xf32> -> vector<1x32xf32>
    %84 = arith.addf %82, %83 : vector<1x32xf32>
    %85 = arith.negf %84 : vector<1x32xf32>
    %86 = math.exp %85 : vector<1x32xf32>
    %cst_56 = arith.constant 1.000000e+00 : f32
    %87 = vector.broadcast %cst_56 : f32 to vector<1x32xf32>
    %88 = arith.addf %87, %86 : vector<1x32xf32>
    %89 = arith.divf %87, %88 : vector<1x32xf32>
    %c4_i32_57 = arith.constant 4 : i32
    %c0_i32_58 = arith.constant 0 : i32
    %90 = tpu.memref_slice %arg1[%20, %c0_i32_58] : memref<16x32xf32, #tpu.memory_space<any>> -> memref<1x32xf32, #tpu.memory_space<any>>
    %c4_i32_59 = arith.constant 4 : i32
    %c0_i32_60 = arith.constant 0 : i32
    %91 = tpu.memref_slice %arg6[%c4_i32_59, %c0_i32_60] : memref<7x32xf32, #tpu.memory_space<vmem>> -> memref<1x32xf32, #tpu.memory_space<vmem>>
    %92 = tpu.memref_slice %arg7[%c4_i32_57] : memref<7x!tpu.dma_semaphore, #tpu.memory_space<semaphore_mem>> -> memref<1x!tpu.dma_semaphore, #tpu.memory_space<semaphore_mem>>
    %93 = tpu.memref_squeeze %92 : memref<1x!tpu.dma_semaphore, #tpu.memory_space<semaphore_mem>> -> memref<!tpu.dma_semaphore, #tpu.memory_space<semaphore_mem>>
    tpu.wait_dma2 semaphore(%93 : memref<!tpu.dma_semaphore, #tpu.memory_space<semaphore_mem>>) src(%90 : memref<1x32xf32, #tpu.memory_space<any>>) dst(%91 : memref<1x32xf32, #tpu.memory_space<vmem>>)
    %c4_61 = arith.constant 4 : index
    %c0_62 = arith.constant 0 : index
    %94 = vector.load %arg6[%c4_61, %c0_62] : memref<7x32xf32, #tpu.memory_space<vmem>>, vector<1x32xf32>
    %95 = arith.addf %94, %36 : vector<1x32xf32>
    %cst_63 = arith.constant dense<0.000000e+00> : vector<1x32xf32>
    %96 = tpu.matmul %89, %35, %cst_63 {dimension_numbers = #tpu.dot_dimension_numbers<[1], [0], [0], [1], [0, 0, 1, 1], [], []>} : vector<1x32xf32>, vector<32x32xf32>, vector<1x32xf32> -> vector<1x32xf32>
    %97 = arith.addf %95, %96 : vector<1x32xf32>
    %98 = arith.negf %97 : vector<1x32xf32>
    %99 = math.exp %98 : vector<1x32xf32>
    %cst_64 = arith.constant 1.000000e+00 : f32
    %100 = vector.broadcast %cst_64 : f32 to vector<1x32xf32>
    %101 = arith.addf %100, %99 : vector<1x32xf32>
    %102 = arith.divf %100, %101 : vector<1x32xf32>
    %c5_i32_65 = arith.constant 5 : i32
    %c0_i32_66 = arith.constant 0 : i32
    %103 = tpu.memref_slice %arg1[%25, %c0_i32_66] : memref<16x32xf32, #tpu.memory_space<any>> -> memref<1x32xf32, #tpu.memory_space<any>>
    %c5_i32_67 = arith.constant 5 : i32
    %c0_i32_68 = arith.constant 0 : i32
    %104 = tpu.memref_slice %arg6[%c5_i32_67, %c0_i32_68] : memref<7x32xf32, #tpu.memory_space<vmem>> -> memref<1x32xf32, #tpu.memory_space<vmem>>
    %105 = tpu.memref_slice %arg7[%c5_i32_65] : memref<7x!tpu.dma_semaphore, #tpu.memory_space<semaphore_mem>> -> memref<1x!tpu.dma_semaphore, #tpu.memory_space<semaphore_mem>>
    %106 = tpu.memref_squeeze %105 : memref<1x!tpu.dma_semaphore, #tpu.memory_space<semaphore_mem>> -> memref<!tpu.dma_semaphore, #tpu.memory_space<semaphore_mem>>
    tpu.wait_dma2 semaphore(%106 : memref<!tpu.dma_semaphore, #tpu.memory_space<semaphore_mem>>) src(%103 : memref<1x32xf32, #tpu.memory_space<any>>) dst(%104 : memref<1x32xf32, #tpu.memory_space<vmem>>)
    %c5_69 = arith.constant 5 : index
    %c0_70 = arith.constant 0 : index
    %107 = vector.load %arg6[%c5_69, %c0_70] : memref<7x32xf32, #tpu.memory_space<vmem>>, vector<1x32xf32>
    %108 = arith.addf %107, %36 : vector<1x32xf32>
    %cst_71 = arith.constant dense<0.000000e+00> : vector<1x32xf32>
    %109 = tpu.matmul %102, %35, %cst_71 {dimension_numbers = #tpu.dot_dimension_numbers<[1], [0], [0], [1], [0, 0, 1, 1], [], []>} : vector<1x32xf32>, vector<32x32xf32>, vector<1x32xf32> -> vector<1x32xf32>
    %110 = arith.addf %108, %109 : vector<1x32xf32>
    %111 = arith.negf %110 : vector<1x32xf32>
    %112 = math.exp %111 : vector<1x32xf32>
    %cst_72 = arith.constant 1.000000e+00 : f32
    %113 = vector.broadcast %cst_72 : f32 to vector<1x32xf32>
    %114 = arith.addf %113, %112 : vector<1x32xf32>
    %115 = arith.divf %113, %114 : vector<1x32xf32>
    %c6_i32_73 = arith.constant 6 : i32
    %c0_i32_74 = arith.constant 0 : i32
    %116 = tpu.memref_slice %arg1[%30, %c0_i32_74] : memref<16x32xf32, #tpu.memory_space<any>> -> memref<1x32xf32, #tpu.memory_space<any>>
    %c6_i32_75 = arith.constant 6 : i32
    %c0_i32_76 = arith.constant 0 : i32
    %117 = tpu.memref_slice %arg6[%c6_i32_75, %c0_i32_76] : memref<7x32xf32, #tpu.memory_space<vmem>> -> memref<1x32xf32, #tpu.memory_space<vmem>>
    %118 = tpu.memref_slice %arg7[%c6_i32_73] : memref<7x!tpu.dma_semaphore, #tpu.memory_space<semaphore_mem>> -> memref<1x!tpu.dma_semaphore, #tpu.memory_space<semaphore_mem>>
    %119 = tpu.memref_squeeze %118 : memref<1x!tpu.dma_semaphore, #tpu.memory_space<semaphore_mem>> -> memref<!tpu.dma_semaphore, #tpu.memory_space<semaphore_mem>>
    tpu.wait_dma2 semaphore(%119 : memref<!tpu.dma_semaphore, #tpu.memory_space<semaphore_mem>>) src(%116 : memref<1x32xf32, #tpu.memory_space<any>>) dst(%117 : memref<1x32xf32, #tpu.memory_space<vmem>>)
    %c6_77 = arith.constant 6 : index
    %c0_78 = arith.constant 0 : index
    %120 = vector.load %arg6[%c6_77, %c0_78] : memref<7x32xf32, #tpu.memory_space<vmem>>, vector<1x32xf32>
    %121 = arith.addf %120, %36 : vector<1x32xf32>
    %cst_79 = arith.constant dense<0.000000e+00> : vector<1x32xf32>
    %122 = tpu.matmul %115, %35, %cst_79 {dimension_numbers = #tpu.dot_dimension_numbers<[1], [0], [0], [1], [0, 0, 1, 1], [], []>} : vector<1x32xf32>, vector<32x32xf32>, vector<1x32xf32> -> vector<1x32xf32>
    %123 = arith.addf %121, %122 : vector<1x32xf32>
    %124 = arith.negf %123 : vector<1x32xf32>
    %125 = math.exp %124 : vector<1x32xf32>
    %cst_80 = arith.constant 1.000000e+00 : f32
    %126 = vector.broadcast %cst_80 : f32 to vector<1x32xf32>
    %127 = arith.addf %126, %125 : vector<1x32xf32>
    %128 = arith.divf %126, %127 : vector<1x32xf32>
    %129 = tpu.concatenate %50, %63, %76, %89, %102, %115, %128 in 0 : vector<1x32xf32>, vector<1x32xf32>, vector<1x32xf32>, vector<1x32xf32>, vector<1x32xf32>, vector<1x32xf32>, vector<1x32xf32> -> vector<7x32xf32>
    %c0_81 = arith.constant 0 : index
    %c0_82 = arith.constant 0 : index
    %130 = vector.load %arg3[%c0_81, %c0_82] : memref<32x128xf32, #tpu.memory_space<vmem>>, vector<32x128xf32>
    %cst_83 = arith.constant dense<0.000000e+00> : vector<7x128xf32>
    %131 = tpu.matmul %129, %130, %cst_83 {dimension_numbers = #tpu.dot_dimension_numbers<[1], [0], [0], [1], [0, 0, 1, 1], [], []>} : vector<7x32xf32>, vector<32x128xf32>, vector<7x128xf32> -> vector<7x128xf32>
    %cst_84 = arith.constant dense<0xFF800000> : vector<7xf32>
    %132 = vector.multi_reduction <maximumf>, %131, %cst_84 [1] : vector<7x128xf32> to vector<7xf32>
    %133 = vector.shape_cast %132 : vector<7xf32> to vector<7x1xf32>
    %134 = vector.broadcast %133 : vector<7x1xf32> to vector<7x128xf32>
    %135 = arith.subf %131, %134 : vector<7x128xf32>
    %136 = math.exp %135 : vector<7x128xf32>
    %137 = tpu.iota {dimensions = array<i32: 1>} : vector<7x128xi32>
    %c16_i32 = arith.constant 16 : i32
    %138 = vector.broadcast %c16_i32 : i32 to vector<7x128xi32>
    %139 = arith.cmpi slt, %137, %138 : vector<7x128xi32>
    %cst_85 = arith.constant 0.000000e+00 : f32
    %140 = vector.broadcast %cst_85 : f32 to vector<7x128xf32>
    %141 = arith.select %139, %136, %140 : vector<7x128xi1>, vector<7x128xf32>
    %cst_86 = arith.constant dense<0.000000e+00> : vector<7xf32>
    %142 = vector.multi_reduction <add>, %141, %cst_86 [1] : vector<7x128xf32> to vector<7xf32>
    %143 = vector.shape_cast %142 : vector<7xf32> to vector<7x1xf32>
    %144 = tpu.reciprocal %143 : vector<7x1xf32> -> vector<7x1xf32>
    %145 = vector.broadcast %144 : vector<7x1xf32> to vector<7x128xf32>
    %146 = arith.mulf %141, %145 : vector<7x128xf32>
    %c0_87 = arith.constant 0 : index
    %c0_88 = arith.constant 0 : index
    %147 = vector.load %arg5[%c0_87, %c0_88] : memref<7x128xf32, #tpu.memory_space<vmem>>, vector<7x128xf32>
    tpu.vector_store %arg5[%c0_87, %c0_88], %146 {strides = array<i32>} : memref<7x128xf32, #tpu.memory_space<vmem>>, vector<7x128xf32>,
    return
  }
}

</mosaic_0001>

<llo_original>
// kernel: tpu_custom_call.1
$region0: #{tpu_custom_call.1}
  #allocation0 [shape = 'u32[]', space=smem, size = 0x4, offset = 0x4, fixed_abs, tag = 'smem constant byte address 0x4 - core index']
  #allocation1 [shape = 'u32[144,128]{1,0:T(1,128)}', space=vmem, size = 0x12000, scoped, tag = 'internal scratch']
  #allocation2 [shape = 'f32[7,32]{1,0:T(8,128)}', space=vmem, size = 0x1000, scoped, tag = 'scratch operand']
  #allocation3 [shape = 's32[7]{0}', space=sflag, size = 0x1c, scoped, tag = 'scratch operand']
  #allocation12 [shape = 's32[]', space=sflag, size = 0x4, offset = 0, fixed_abs, tag = 'sflag constant byte address 0x0 - dummy sync flag']
  #allocation13 [shape = 's32[]', space=sflag, size = 0x4, offset = 0, fixed_abs, tag = 'sflag constant byte address 0x0 - dummy sync flag']
  #allocation14 [shape = 'u32[]', space=smem, size = 0x4, offset = 0x44, fixed_abs, tag = 'smem constant byte address 0x44 - assertion arg 0']
  #allocation15 [shape = 'u32[]', space=smem, size = 0x4, offset = 0x48, fixed_abs, tag = 'smem constant byte address 0x48 - assertion arg 1']
  #allocation16 [shape = 's32[]', space=sflag, size = 0x4, offset = 0, fixed_abs, tag = 'sflag constant byte address 0x0 - dummy sync flag']
  #allocation17 [shape = 's32[]', space=sflag, size = 0x4, offset = 0, fixed_abs, tag = 'sflag constant byte address 0x0 - dummy sync flag']
  #allocation18 [shape = 's32[]', space=sflag, size = 0x4, offset = 0, fixed_abs, tag = 'sflag constant byte address 0x0 - dummy sync flag']
  #allocation19 [shape = 's32[]', space=sflag, size = 0x4, offset = 0, fixed_abs, tag = 'sflag constant byte address 0x0 - dummy sync flag']
  #allocation20 [shape = 's32[]', space=sflag, size = 0x4, offset = 0, fixed_abs, tag = 'sflag constant byte address 0x0 - dummy sync flag']
  #allocation21 [shape = 's32[]', space=sflag, size = 0x4, offset = 0, fixed_abs, tag = 'sflag constant byte address 0x0 - dummy sync flag']
  #allocation22 [shape = 's32[]', space=sflag, size = 0x4, offset = 0, fixed_abs, tag = 'sflag constant byte address 0x0 - dummy sync flag']
  #allocation23 [shape = 's32[]', space=sflag, size = 0x4, offset = 0, fixed_abs, tag = 'sflag constant byte address 0x0 - dummy sync flag']
  #allocation24 [shape = 's32[]', space=sflag, size = 0x4, offset = 0, fixed_abs, tag = 'sflag constant byte address 0x0 - dummy sync flag']
  #allocation25 [shape = 's32[]', space=sflag, size = 0x4, offset = 0, fixed_abs, tag = 'sflag constant byte address 0x0 - dummy sync flag']
  #allocation26 [shape = 's32[]', space=sflag, size = 0x4, offset = 0, fixed_abs, tag = 'sflag constant byte address 0x0 - dummy sync flag']
  #allocation27 [shape = 's32[]', space=sflag, size = 0x4, offset = 0, fixed_abs, tag = 'sflag constant byte address 0x0 - dummy sync flag']
  %s0 = inlined_call_operand.hbm [shape: s32[8], index: 0, kind: input, shape index: {}]
  %s1 = inlined_call_operand.hbm [shape: f32[16,32], index: 1, kind: input, shape index: {}]
  %s2 = inlined_call_operand.hbm [shape: f32[32,32], index: 2, kind: input, shape index: {}]
  %s3 = inlined_call_operand.hbm [shape: f32[32,128], index: 3, kind: input, shape index: {}]
  %s4 = inlined_call_operand.vmem [shape: f32[1,32], index: 4, kind: input, shape index: {}]
  %s5 = inlined_call_operand.hbm [shape: f32[7,128], index: 5, kind: output, shape index: {}]
  %s6 = sld [smem:[#allocation0]]
  $region66: #{tpu_custom_call.1} parent=0
    _
  %s8 = ssub.s32 1, %s6
  %s9 = scalar_select 0, %s8, %s6
  $region1: #{tpu_custom_call.1} parent=0
    #allocation4 [shape = 'u8[512]{0}', space=smem, size = 0x200, scoped, tag = 'input window, operand 0, single buffered']
    #allocation5 [shape = 's32[1]{0}', space=sflag, size = 0x4, scoped, tag = 'scoped memory for tpu_custom_call.1']
    #allocation6 [shape = 's32[1]{0}', space=sflag, size = 0x4, scoped, tag = 'scoped memory for tpu_custom_call.1']
    #allocation7 [shape = 's32[1]{0}', space=sflag, size = 0x4, scoped, tag = 'scoped memory for tpu_custom_call.1']
    #allocation8 [shape = 'u8[16384]{0}', space=vmem, size = 0x4000, scoped, tag = 'input window, operand 2, single buffered']
    #allocation9 [shape = 'u8[16384]{0}', space=vmem, size = 0x4000, scoped, tag = 'input window, operand 3, single buffered']
    #allocation10 [shape = 's32[1]{0}', space=sflag, size = 0x4, scoped, tag = 'scoped memory for tpu_custom_call.1']
    #allocation11 [shape = 'u8[4096]{0}', space=vmem, size = 0x1000, scoped, tag = 'output window, operand 0, single buffered']
    %10 = vsyncpa [#allocation7], 0
    %11 = vsyncpa [#allocation5], 0
    %12 = vsyncpa [#allocation10], 0
    %13 = vsyncpa [#allocation6], 0
    // Predicated region
    $region2: #{tpu_custom_call.1} parent=1 // pred_check
      _
    $region3: #{tpu_custom_call.1} parent=1 // pred_check_branch
      %15 = sbr.rel (0) target = $region5
    $region4: #{tpu_custom_call.1} parent=1 // pred_region
      %s17 = ssub.s32 16, 16
      %18 = vsyncadd [#allocation7], %s17
      %21 = dma.hbm_to_smem %s0, 16, [#allocation4], [#allocation7]
    $region5: #{tpu_custom_call.1} parent=1 // pred_fallthru
      _
    // Predicated region
    $region6: #{tpu_custom_call.1} parent=1 // pred_check
      _
    $region7: #{tpu_custom_call.1} parent=1 // pred_check_branch
      %23 = sbr.rel (0) target = $region9
    $region8: #{tpu_custom_call.1} parent=1 // pred_region
      %s25 = ssub.s32 512, 512
      %26 = vsyncadd [#allocation5], %s25
      %s27 = sshll.u32 [#allocation8], 4
      %s28 = int_to_ptr.vmem [resolvable:$true] %s27
      %33 = dma.hbm_to_vmem [thread:$0]  %s2, 512, %s28, [#allocation5], 128, 128, 8
    $region9: #{tpu_custom_call.1} parent=1 // pred_fallthru
      _
    // Predicated region
    $region10: #{tpu_custom_call.1} parent=1 // pred_check
      _
    $region11: #{tpu_custom_call.1} parent=1 // pred_check_branch
      %35 = sbr.rel (0) target = $region13
    $region12: #{tpu_custom_call.1} parent=1 // pred_region
      %s37 = ssub.s32 512, 512
      %38 = vsyncadd [#allocation10], %s37
      %s39 = sshll.u32 [#allocation9], 4
      %s40 = int_to_ptr.vmem [resolvable:$true] %s39
      %45 = dma.hbm_to_vmem [thread:$0]  %s3, 512, %s40, [#allocation10], 128, 128, 8
    $region13: #{tpu_custom_call.1} parent=1 // pred_fallthru
      _
    // Predicated region
    $region14: #{tpu_custom_call.1} parent=1 // pred_check
      _
    $region15: #{tpu_custom_call.1} parent=1 // pred_check_branch
      %47 = sbr.rel (0) target = $region17
    $region16: #{tpu_custom_call.1} parent=1 // pred_region
      _
    $region17: #{tpu_custom_call.1} parent=1 // pred_fallthru
      _
    // Predicated region
    $region18: #{tpu_custom_call.1} parent=1 // pred_check
      _
    $region19: #{tpu_custom_call.1} parent=1 // pred_check_branch
      %49 = sbr.rel (0) target = $region21
    $region20: #{tpu_custom_call.1} parent=1 // pred_region
      %50 = dma.done [#allocation7], 16
    $region21: #{tpu_custom_call.1} parent=1 // pred_fallthru
      _
    // Predicated region
    $region22: #{tpu_custom_call.1} parent=1 // pred_check
      _
    $region23: #{tpu_custom_call.1} parent=1 // pred_check_branch
      %52 = sbr.rel (0) target = $region25
    $region24: #{tpu_custom_call.1} parent=1 // pred_region
      %53 = dma.done [#allocation5], 512
    $region25: #{tpu_custom_call.1} parent=1 // pred_fallthru
      _
    // Predicated region
    $region26: #{tpu_custom_call.1} parent=1 // pred_check
      _
    $region27: #{tpu_custom_call.1} parent=1 // pred_check_branch
      %55 = sbr.rel (0) target = $region29
    $region28: #{tpu_custom_call.1} parent=1 // pred_region
      %56 = dma.done [#allocation10], 512
    $region29: #{tpu_custom_call.1} parent=1 // pred_fallthru
      _
    %57 = sfence
    %s58 = sld [smem:[#allocation4]]
    %s59 = smul.addr %s58, 16
    %s60 = scalar_lea.hbm %s1, %s59
    // Predicated region
    $region30: #{tpu_custom_call.1} parent=1 // pred_check
      _
    $region31: #{tpu_custom_call.1} parent=1 // pred_check_branch
      %62 = sbr.rel target = $region33
    $region32: #{tpu_custom_call.1} parent=1 // pred_region
      %63 = sst [smem:[#allocation14]] [#allocation13]
      %64 = sst [smem:[#allocation15]] [#allocation12]
    $region33: #{tpu_custom_call.1} parent=1 // pred_fallthru
      _
    %66 = shalt.err (0)
    %s68 = sshll.u32 [#allocation2], 4
    %s69 = int_to_ptr.vmem [resolvable:$true] %s68
    %71 = dma.hbm_to_vmem [thread:$0]  %s60, 16, %s69, [#allocation3]
    %s72 = sld [smem:[#allocation4 + $0x1]]
    %s73 = smul.addr %s72, 16
    %s74 = scalar_lea.hbm %s1, %s73
    %s75 = scalar_lea.vmem [#allocation2], 1
    %s76 = scalar_lea.sflag [#allocation3], 1
    // Predicated region
    $region34: #{tpu_custom_call.1} parent=1 // pred_check
      _
    $region35: #{tpu_custom_call.1} parent=1 // pred_check_branch
      %78 = sbr.rel target = $region37
    $region36: #{tpu_custom_call.1} parent=1 // pred_region
      %79 = sst [smem:[#allocation14]] [#allocation17]
      %80 = sst [smem:[#allocation15]] [#allocation16]
    $region37: #{tpu_custom_call.1} parent=1 // pred_fallthru
      _
    %82 = shalt.err (0)
    %s84 = sshll.u32 %s75, 4
    %s85 = int_to_ptr.vmem [resolvable:$true] %s84
    %87 = dma.hbm_to_vmem [thread:$0]  %s74, 16, %s85, %s76
    %s88 = sld [smem:[#allocation4 + $0x2]]
    %s89 = smul.addr %s88, 16
    %s90 = scalar_lea.hbm %s1, %s89
    %s91 = scalar_lea.vmem [#allocation2], 2
    %s92 = scalar_lea.sflag [#allocation3], 2
    // Predicated region
    $region38: #{tpu_custom_call.1} parent=1 // pred_check
      _
    $region39: #{tpu_custom_call.1} parent=1 // pred_check_branch
      %94 = sbr.rel target = $region41
    $region40: #{tpu_custom_call.1} parent=1 // pred_region
      %95 = sst [smem:[#allocation14]] [#allocation19]
      %96 = sst [smem:[#allocation15]] [#allocation18]
    $region41: #{tpu_custom_call.1} parent=1 // pred_fallthru
      _
    %98 = shalt.err (0)
    %s100 = sshll.u32 %s91, 4
    %s101 = int_to_ptr.vmem [resolvable:$true] %s100
    %103 = dma.hbm_to_vmem [thread:$0]  %s90, 16, %s101, %s92
    %s104 = sld [smem:[#allocation4 + $0x3]]
    %s105 = smul.addr %s104, 16
    %s106 = scalar_lea.hbm %s1, %s105
    %s107 = scalar_lea.vmem [#allocation2], 3
    %s108 = scalar_lea.sflag [#allocation3], 3
    // Predicated region
    $region42: #{tpu_custom_call.1} parent=1 // pred_check
      _
    $region43: #{tpu_custom_call.1} parent=1 // pred_check_branch
      %110 = sbr.rel target = $region45
    $region44: #{tpu_custom_call.1} parent=1 // pred_region
      %111 = sst [smem:[#allocation14]] [#allocation21]
      %112 = sst [smem:[#allocation15]] [#allocation20]
    $region45: #{tpu_custom_call.1} parent=1 // pred_fallthru
      _
    %114 = shalt.err (0)
    %s116 = sshll.u32 %s107, 4
    %s117 = int_to_ptr.vmem [resolvable:$true] %s116
    %119 = dma.hbm_to_vmem [thread:$0]  %s106, 16, %s117, %s108
    %s120 = sld [smem:[#allocation4 + $0x4]]
    %s121 = smul.addr %s120, 16
    %s122 = scalar_lea.hbm %s1, %s121
    %s123 = scalar_lea.vmem [#allocation2], 4
    %s124 = scalar_lea.sflag [#allocation3], 4
    // Predicated region
    $region46: #{tpu_custom_call.1} parent=1 // pred_check
      _
    $region47: #{tpu_custom_call.1} parent=1 // pred_check_branch
      %126 = sbr.rel target = $region49
    $region48: #{tpu_custom_call.1} parent=1 // pred_region
      %127 = sst [smem:[#allocation14]] [#allocation23]
      %128 = sst [smem:[#allocation15]] [#allocation22]
    $region49: #{tpu_custom_call.1} parent=1 // pred_fallthru
      _
    %130 = shalt.err (0)
    %s132 = sshll.u32 %s123, 4
    %s133 = int_to_ptr.vmem [resolvable:$true] %s132
    %135 = dma.hbm_to_vmem [thread:$0]  %s122, 16, %s133, %s124
    %s136 = sld [smem:[#allocation4 + $0x5]]
    %s137 = smul.addr %s136, 16
    %s138 = scalar_lea.hbm %s1, %s137
    %s139 = scalar_lea.vmem [#allocation2], 5
    %s140 = scalar_lea.sflag [#allocation3], 5
    // Predicated region
    $region50: #{tpu_custom_call.1} parent=1 // pred_check
      _
    $region51: #{tpu_custom_call.1} parent=1 // pred_check_branch
      %142 = sbr.rel target = $region53
    $region52: #{tpu_custom_call.1} parent=1 // pred_region
      %143 = sst [smem:[#allocation14]] [#allocation25]
      %144 = sst [smem:[#allocation15]] [#allocation24]
    $region53: #{tpu_custom_call.1} parent=1 // pred_fallthru
      _
    %146 = shalt.err (0)
    %s148 = sshll.u32 %s139, 4
    %s149 = int_to_ptr.vmem [resolvable:$true] %s148
    %151 = dma.hbm_to_vmem [thread:$0]  %s138, 16, %s149, %s140
    %s152 = sld [smem:[#allocation4 + $0x6]]
    %s153 = smul.addr %s152, 16
    %s154 = scalar_lea.hbm %s1, %s153
    %s155 = scalar_lea.vmem [#allocation2], 6
    %s156 = scalar_lea.sflag [#allocation3], 6
    // Predicated region
    $region54: #{tpu_custom_call.1} parent=1 // pred_check
      _
    $region55: #{tpu_custom_call.1} parent=1 // pred_check_branch
      %158 = sbr.rel target = $region57
    $region56: #{tpu_custom_call.1} parent=1 // pred_region
      %159 = sst [smem:[#allocation14]] [#allocation27]
      %160 = sst [smem:[#allocation15]] [#allocation26]
    $region57: #{tpu_custom_call.1} parent=1 // pred_fallthru
      _
    %162 = shalt.err (0)
    %s164 = sshll.u32 %s155, 4
    %s165 = int_to_ptr.vmem [resolvable:$true] %s164
    %167 = dma.hbm_to_vmem [thread:$0]  %s154, 16, %s165, %s156
    %v168 = vld [vmem:[#allocation8] sm:$0xff]
    %v169 = vld [vmem:[#allocation8 + $0x8] sm:$0xff]
    %v170 = vld [vmem:[#allocation8 + $0x10] sm:$0xff]
    %v171 = vld [vmem:[#allocation8 + $0x18] sm:$0xff]
    %v172 = vld [vmem:[%s4] sm:$0x1]
    %s173 = smul.u32 1, 1
    %s174 = sshll.u32 %s173, 4
    %175 = dma.done [#allocation3], %s174
    %v176 = vld [vmem:[#allocation2] sm:$0x1]
    %v177 = vadd.f32 %v176, %v172
    %vm178 = vcmask 261120
    %v180 = vsel %vm178, 0.0, 0
    %182 = vmatprep.subr.mxu0 0.0
    %183 = vmatpush1.msra.mxu0 0.0
    %184 = vmatprep.subr.mxu0 0.0
    %185 = vmatpush1.msra.mxu0 0.0
    %186 = vmatprep.subr.mxu0 0.0
    %187 = vmatpush1.msra.mxu0 0.0
    %188 = vmatprep.subr.mxu0 0.0
    %189 = vmatpush1.msra.mxu0 0.0
    %190 = vmatprep.subr.mxu0 0.0
    %191 = vmatpush1.msra.mxu0 0.0
    %192 = vmatprep.subr.mxu0 0.0
    %193 = vmatpush1.msra.mxu0 0.0
    %194 = vmatprep.subr.mxu0 0.0
    %195 = vmatpush1.msra.mxu0 0.0
    %196 = vmatprep.subr.mxu0 0.0
    %197 = vmatpush1.msra.mxu0 0.0
    %198 = vmatprep.subr.mxu0 0.0
    %199 = vmatpush1.msra.mxu0 0.0
    %200 = vmatprep.subr.mxu0 0.0
    %201 = vmatpush1.msra.mxu0 0.0
    %202 = vmatprep.subr.mxu0 0.0
    %203 = vmatpush1.msra.mxu0 0.0
    %204 = vmatprep.subr.mxu0 0.0
    %205 = vmatpush1.msra.mxu0 0.0
    %206 = vmatprep.subr.mxu0 0.0
    %207 = vmatpush1.msra.mxu0 %v171
    %208 = vmatprep.subr.mxu0 0.0
    %209 = vmatpush1.msra.mxu0 %v170
    %210 = vmatprep.subr.mxu0 0.0
    %211 = vmatpush1.msra.mxu0 %v169
    %212 = vmatprep.subr.mxu0 0.0
    %213 = vmatpush1.msra.mxu0 %v168
    %214 = vmatprep.subr.mxu0 0.0
    %215 = vmatpush2.msra.mxu0 0.0
    %216 = vmatprep.subr.mxu0 0.0
    %217 = vmatpush2.msra.mxu0 0.0
    %218 = vmatprep.subr.mxu0 0.0
    %219 = vmatpush2.msra.mxu0 0.0
    %220 = vmatprep.subr.mxu0 0.0
    %221 = vmatpush2.msra.mxu0 0.0
    %222 = vmatprep.subr.mxu0 0.0
    %223 = vmatpush2.msra.mxu0 0.0
    %224 = vmatprep.subr.mxu0 0.0
    %225 = vmatpush2.msra.mxu0 0.0
    %226 = vmatprep.subr.mxu0 0.0
    %227 = vmatpush2.msra.mxu0 0.0
    %228 = vmatprep.subr.mxu0 0.0
    %229 = vmatpush2.msra.mxu0 0.0
    %230 = vmatprep.subr.mxu0 0.0
    %231 = vmatpush2.msra.mxu0 0.0
    %232 = vmatprep.subr.mxu0 0.0
    %233 = vmatpush2.msra.mxu0 0.0
    %234 = vmatprep.subr.mxu0 0.0
    %235 = vmatpush2.msra.mxu0 0.0
    %236 = vmatprep.subr.mxu0 0.0
    %237 = vmatpush2.msra.mxu0 0.0
    %238 = vmatprep.subr.mxu0 0.0
    %239 = vmatpush2.msra.mxu0 0.0
    %240 = vmatprep.subr.mxu0 0.0
    %241 = vmatpush2.msra.mxu0 0.0
    %242 = vmatprep.subr.mxu0 0.0
    %243 = vmatpush2.msra.mxu0 0.0
    %244 = vmatprep.subr.mxu0 0.0
    %245 = vmatpush2.msra.mxu0 0.0
    %246 = vmatprep.mubr.f32.mxu0 0.0
    %247 = vmatmul.mubr.f32.gmra.mxu0 %v180
    %v248 = vpop.f32.mrf.mxu0
    %v249 = vadd.f32 0.0, %v248
    %v250 = vpop.f32.mrf.mxu0
    %251 = vdwg.mxu0
    %v252 = vadd.f32 %v177, %v249
    %v253 = vxor.u32 %v252, 2147483648
    %v254 = vmul.f32 %v253, 1.442695
    %v255 = vpow.pop %v254
    %v256 = vadd.f32 %v255, 1.0
    %v257 = vrcp.pop %v256
    %v258 = vmul.f32 1.0, %v257
    %s259 = sshll.u32 %s173, 4
    %260 = dma.done %s76, %s259
    %v261 = vld [vmem:[#allocation2 + $0x1] sm:$0x1]
    %v262 = vadd.f32 %v261, %v172
    %v264 = vsel %vm178, %v258, 0
    %266 = vmatprep.subr.mxu0 0.0
    %267 = vmatpush1.msra.mxu0 0.0
    %268 = vmatprep.subr.mxu0 0.0
    %269 = vmatpush1.msra.mxu0 0.0
    %270 = vmatprep.subr.mxu0 0.0
    %271 = vmatpush1.msra.mxu0 0.0
    %272 = vmatprep.subr.mxu0 0.0
    %273 = vmatpush1.msra.mxu0 0.0
    %274 = vmatprep.subr.mxu0 0.0
    %275 = vmatpush1.msra.mxu0 0.0
    %276 = vmatprep.subr.mxu0 0.0
    %277 = vmatpush1.msra.mxu0 0.0
    %278 = vmatprep.subr.mxu0 0.0
    %279 = vmatpush1.msra.mxu0 0.0
    %280 = vmatprep.subr.mxu0 0.0
    %281 = vmatpush1.msra.mxu0 0.0
    %282 = vmatprep.subr.mxu0 0.0
    %283 = vmatpush1.msra.mxu0 0.0
    %284 = vmatprep.subr.mxu0 0.0
    %285 = vmatpush1.msra.mxu0 0.0
    %286 = vmatprep.subr.mxu0 0.0
    %287 = vmatpush1.msra.mxu0 0.0
    %288 = vmatprep.subr.mxu0 0.0
    %289 = vmatpush1.msra.mxu0 0.0
    %290 = vmatprep.subr.mxu0 0.0
    %291 = vmatpush1.msra.mxu0 %v171
    %292 = vmatprep.subr.mxu0 0.0
    %293 = vmatpush1.msra.mxu0 %v170
    %294 = vmatprep.subr.mxu0 0.0
    %295 = vmatpush1.msra.mxu0 %v169
    %296 = vmatprep.subr.mxu0 0.0
    %297 = vmatpush1.msra.mxu0 %v168
    %298 = vmatprep.subr.mxu0 0.0
    %299 = vmatpush2.msra.mxu0 0.0
    %300 = vmatprep.subr.mxu0 0.0
    %301 = vmatpush2.msra.mxu0 0.0
    %302 = vmatprep.subr.mxu0 0.0
    %303 = vmatpush2.msra.mxu0 0.0
    %304 = vmatprep.subr.mxu0 0.0
    %305 = vmatpush2.msra.mxu0 0.0
    %306 = vmatprep.subr.mxu0 0.0
    %307 = vmatpush2.msra.mxu0 0.0
    %308 = vmatprep.subr.mxu0 0.0
    %309 = vmatpush2.msra.mxu0 0.0
    %310 = vmatprep.subr.mxu0 0.0
    %311 = vmatpush2.msra.mxu0 0.0
    %312 = vmatprep.subr.mxu0 0.0
    %313 = vmatpush2.msra.mxu0 0.0
    %314 = vmatprep.subr.mxu0 0.0
    %315 = vmatpush2.msra.mxu0 0.0
    %316 = vmatprep.subr.mxu0 0.0
    %317 = vmatpush2.msra.mxu0 0.0
    %318 = vmatprep.subr.mxu0 0.0
    %319 = vmatpush2.msra.mxu0 0.0
    %320 = vmatprep.subr.mxu0 0.0
    %321 = vmatpush2.msra.mxu0 0.0
    %322 = vmatprep.subr.mxu0 0.0
    %323 = vmatpush2.msra.mxu0 0.0
    %324 = vmatprep.subr.mxu0 0.0
    %325 = vmatpush2.msra.mxu0 0.0
    %326 = vmatprep.subr.mxu0 0.0
    %327 = vmatpush2.msra.mxu0 0.0
    %328 = vmatprep.subr.mxu0 0.0
    %329 = vmatpush2.msra.mxu0 0.0
    %330 = vmatprep.mubr.f32.mxu0 0.0
    %331 = vmatmul.mubr.f32.gmra.mxu0 %v264
    %v332 = vpop.f32.mrf.mxu0
    %v333 = vadd.f32 0.0, %v332
    %v334 = vpop.f32.mrf.mxu0
    %335 = vdwg.mxu0
    %v336 = vadd.f32 %v262, %v333
    %v337 = vxor.u32 %v336, 2147483648
    %v338 = vmul.f32 %v337, 1.442695
    %v339 = vpow.pop %v338
    %v340 = vadd.f32 %v339, 1.0
    %v341 = vrcp.pop %v340
    %v342 = vmul.f32 1.0, %v341
    %s343 = sshll.u32 %s173, 4
    %344 = dma.done %s92, %s343
    %v345 = vld [vmem:[#allocation2 + $0x2] sm:$0x1]
    %v346 = vadd.f32 %v345, %v172
    %v348 = vsel %vm178, %v342, 0
    %350 = vmatprep.subr.mxu0 0.0
    %351 = vmatpush1.msra.mxu0 0.0
    %352 = vmatprep.subr.mxu0 0.0
    %353 = vmatpush1.msra.mxu0 0.0
    %354 = vmatprep.subr.mxu0 0.0
    %355 = vmatpush1.msra.mxu0 0.0
    %356 = vmatprep.subr.mxu0 0.0
    %357 = vmatpush1.msra.mxu0 0.0
    %358 = vmatprep.subr.mxu0 0.0
    %359 = vmatpush1.msra.mxu0 0.0
    %360 = vmatprep.subr.mxu0 0.0
    %361 = vmatpush1.msra.mxu0 0.0
    %362 = vmatprep.subr.mxu0 0.0
    %363 = vmatpush1.msra.mxu0 0.0
    %364 = vmatprep.subr.mxu0 0.0
    %365 = vmatpush1.msra.mxu0 0.0
    %366 = vmatprep.subr.mxu0 0.0
    %367 = vmatpush1.msra.mxu0 0.0
    %368 = vmatprep.subr.mxu0 0.0
    %369 = vmatpush1.msra.mxu0 0.0
    %370 = vmatprep.subr.mxu0 0.0
    %371 = vmatpush1.msra.mxu0 0.0
    %372 = vmatprep.subr.mxu0 0.0
    %373 = vmatpush1.msra.mxu0 0.0
    %374 = vmatprep.subr.mxu0 0.0
    %375 = vmatpush1.msra.mxu0 %v171
    %376 = vmatprep.subr.mxu0 0.0
    %377 = vmatpush1.msra.mxu0 %v170
    %378 = vmatprep.subr.mxu0 0.0
    %379 = vmatpush1.msra.mxu0 %v169
    %380 = vmatprep.subr.mxu0 0.0
    %381 = vmatpush1.msra.mxu0 %v168
    %382 = vmatprep.subr.mxu0 0.0
    %383 = vmatpush2.msra.mxu0 0.0
    %384 = vmatprep.subr.mxu0 0.0
    %385 = vmatpush2.msra.mxu0 0.0
    %386 = vmatprep.subr.mxu0 0.0
    %387 = vmatpush2.msra.mxu0 0.0
    %388 = vmatprep.subr.mxu0 0.0
    %389 = vmatpush2.msra.mxu0 0.0
    %390 = vmatprep.subr.mxu0 0.0
    %391 = vmatpush2.msra.mxu0 0.0
    %392 = vmatprep.subr.mxu0 0.0
    %393 = vmatpush2.msra.mxu0 0.0
    %394 = vmatprep.subr.mxu0 0.0
    %395 = vmatpush2.msra.mxu0 0.0
    %396 = vmatprep.subr.mxu0 0.0
    %397 = vmatpush2.msra.mxu0 0.0
    %398 = vmatprep.subr.mxu0 0.0
    %399 = vmatpush2.msra.mxu0 0.0
    %400 = vmatprep.subr.mxu0 0.0
    %401 = vmatpush2.msra.mxu0 0.0
    %402 = vmatprep.subr.mxu0 0.0
    %403 = vmatpush2.msra.mxu0 0.0
    %404 = vmatprep.subr.mxu0 0.0
    %405 = vmatpush2.msra.mxu0 0.0
    %406 = vmatprep.subr.mxu0 0.0
    %407 = vmatpush2.msra.mxu0 0.0
    %408 = vmatprep.subr.mxu0 0.0
    %409 = vmatpush2.msra.mxu0 0.0
    %410 = vmatprep.subr.mxu0 0.0
    %411 = vmatpush2.msra.mxu0 0.0
    %412 = vmatprep.subr.mxu0 0.0
    %413 = vmatpush2.msra.mxu0 0.0
    %414 = vmatprep.mubr.f32.mxu0 0.0
    %415 = vmatmul.mubr.f32.gmra.mxu0 %v348
    %v416 = vpop.f32.mrf.mxu0
    %v417 = vadd.f32 0.0, %v416
    %v418 = vpop.f32.mrf.mxu0
    %419 = vdwg.mxu0
    %v420 = vadd.f32 %v346, %v417
    %v421 = vxor.u32 %v420, 2147483648
    %v422 = vmul.f32 %v421, 1.442695
    %v423 = vpow.pop %v422
    %v424 = vadd.f32 %v423, 1.0
    %v425 = vrcp.pop %v424
    %v426 = vmul.f32 1.0, %v425
    %s427 = sshll.u32 %s173, 4
    %428 = dma.done %s108, %s427
    %v429 = vld [vmem:[#allocation2 + $0x3] sm:$0x1]
    %v430 = vadd.f32 %v429, %v172
    %v432 = vsel %vm178, %v426, 0
    %434 = vmatprep.subr.mxu0 0.0
    %435 = vmatpush1.msra.mxu0 0.0
    %436 = vmatprep.subr.mxu0 0.0
    %437 = vmatpush1.msra.mxu0 0.0
    %438 = vmatprep.subr.mxu0 0.0
    %439 = vmatpush1.msra.mxu0 0.0
    %440 = vmatprep.subr.mxu0 0.0
    %441 = vmatpush1.msra.mxu0 0.0
    %442 = vmatprep.subr.mxu0 0.0
    %443 = vmatpush1.msra.mxu0 0.0
    %444 = vmatprep.subr.mxu0 0.0
    %445 = vmatpush1.msra.mxu0 0.0
    %446 = vmatprep.subr.mxu0 0.0
    %447 = vmatpush1.msra.mxu0 0.0
    %448 = vmatprep.subr.mxu0 0.0
    %449 = vmatpush1.msra.mxu0 0.0
    %450 = vmatprep.subr.mxu0 0.0
    %451 = vmatpush1.msra.mxu0 0.0
    %452 = vmatprep.subr.mxu0 0.0
    %453 = vmatpush1.msra.mxu0 0.0
    %454 = vmatprep.subr.mxu0 0.0
    %455 = vmatpush1.msra.mxu0 0.0
    %456 = vmatprep.subr.mxu0 0.0
    %457 = vmatpush1.msra.mxu0 0.0
    %458 = vmatprep.subr.mxu0 0.0
    %459 = vmatpush1.msra.mxu0 %v171
    %460 = vmatprep.subr.mxu0 0.0
    %461 = vmatpush1.msra.mxu0 %v170
    %462 = vmatprep.subr.mxu0 0.0
    %463 = vmatpush1.msra.mxu0 %v169
    %464 = vmatprep.subr.mxu0 0.0
    %465 = vmatpush1.msra.mxu0 %v168
    %466 = vmatprep.subr.mxu0 0.0
    %467 = vmatpush2.msra.mxu0 0.0
    %468 = vmatprep.subr.mxu0 0.0
    %469 = vmatpush2.msra.mxu0 0.0
    %470 = vmatprep.subr.mxu0 0.0
    %471 = vmatpush2.msra.mxu0 0.0
    %472 = vmatprep.subr.mxu0 0.0
    %473 = vmatpush2.msra.mxu0 0.0
    %474 = vmatprep.subr.mxu0 0.0
    %475 = vmatpush2.msra.mxu0 0.0
    %476 = vmatprep.subr.mxu0 0.0
    %477 = vmatpush2.msra.mxu0 0.0
    %478 = vmatprep.subr.mxu0 0.0
    %479 = vmatpush2.msra.mxu0 0.0
    %480 = vmatprep.subr.mxu0 0.0
    %481 = vmatpush2.msra.mxu0 0.0
    %482 = vmatprep.subr.mxu0 0.0
    %483 = vmatpush2.msra.mxu0 0.0
    %484 = vmatprep.subr.mxu0 0.0
    %485 = vmatpush2.msra.mxu0 0.0
    %486 = vmatprep.subr.mxu0 0.0
    %487 = vmatpush2.msra.mxu0 0.0
    %488 = vmatprep.subr.mxu0 0.0
    %489 = vmatpush2.msra.mxu0 0.0
    %490 = vmatprep.subr.mxu0 0.0
    %491 = vmatpush2.msra.mxu0 0.0
    %492 = vmatprep.subr.mxu0 0.0
    %493 = vmatpush2.msra.mxu0 0.0
    %494 = vmatprep.subr.mxu0 0.0
    %495 = vmatpush2.msra.mxu0 0.0
    %496 = vmatprep.subr.mxu0 0.0
    %497 = vmatpush2.msra.mxu0 0.0
    %498 = vmatprep.mubr.f32.mxu0 0.0
    %499 = vmatmul.mubr.f32.gmra.mxu0 %v432
    %v500 = vpop.f32.mrf.mxu0
    %v501 = vadd.f32 0.0, %v500
    %v502 = vpop.f32.mrf.mxu0
    %503 = vdwg.mxu0
    %v504 = vadd.f32 %v430, %v501
    %v505 = vxor.u32 %v504, 2147483648
    %v506 = vmul.f32 %v505, 1.442695
    %v507 = vpow.pop %v506
    %v508 = vadd.f32 %v507, 1.0
    %v509 = vrcp.pop %v508
    %v510 = vmul.f32 1.0, %v509
    %s511 = sshll.u32 %s173, 4
    %512 = dma.done %s124, %s511
    %v513 = vld [vmem:[#allocation2 + $0x4] sm:$0x1]
    %v514 = vadd.f32 %v513, %v172
    %v516 = vsel %vm178, %v510, 0
    %518 = vmatprep.subr.mxu0 0.0
    %519 = vmatpush1.msra.mxu0 0.0
    %520 = vmatprep.subr.mxu0 0.0
    %521 = vmatpush1.msra.mxu0 0.0
    %522 = vmatprep.subr.mxu0 0.0
    %523 = vmatpush1.msra.mxu0 0.0
    %524 = vmatprep.subr.mxu0 0.0
    %525 = vmatpush1.msra.mxu0 0.0
    %526 = vmatprep.subr.mxu0 0.0
    %527 = vmatpush1.msra.mxu0 0.0
    %528 = vmatprep.subr.mxu0 0.0
    %529 = vmatpush1.msra.mxu0 0.0
    %530 = vmatprep.subr.mxu0 0.0
    %531 = vmatpush1.msra.mxu0 0.0
    %532 = vmatprep.subr.mxu0 0.0
    %533 = vmatpush1.msra.mxu0 0.0
    %534 = vmatprep.subr.mxu0 0.0
    %535 = vmatpush1.msra.mxu0 0.0
    %536 = vmatprep.subr.mxu0 0.0
    %537 = vmatpush1.msra.mxu0 0.0
    %538 = vmatprep.subr.mxu0 0.0
    %539 = vmatpush1.msra.mxu0 0.0
    %540 = vmatprep.subr.mxu0 0.0
    %541 = vmatpush1.msra.mxu0 0.0
    %542 = vmatprep.subr.mxu0 0.0
    %543 = vmatpush1.msra.mxu0 %v171
    %544 = vmatprep.subr.mxu0 0.0
    %545 = vmatpush1.msra.mxu0 %v170
    %546 = vmatprep.subr.mxu0 0.0
    %547 = vmatpush1.msra.mxu0 %v169
    %548 = vmatprep.subr.mxu0 0.0
    %549 = vmatpush1.msra.mxu0 %v168
    %550 = vmatprep.subr.mxu0 0.0
    %551 = vmatpush2.msra.mxu0 0.0
    %552 = vmatprep.subr.mxu0 0.0
    %553 = vmatpush2.msra.mxu0 0.0
    %554 = vmatprep.subr.mxu0 0.0
    %555 = vmatpush2.msra.mxu0 0.0
    %556 = vmatprep.subr.mxu0 0.0
    %557 = vmatpush2.msra.mxu0 0.0
    %558 = vmatprep.subr.mxu0 0.0
    %559 = vmatpush2.msra.mxu0 0.0
    %560 = vmatprep.subr.mxu0 0.0
    %561 = vmatpush2.msra.mxu0 0.0
    %562 = vmatprep.subr.mxu0 0.0
    %563 = vmatpush2.msra.mxu0 0.0
    %564 = vmatprep.subr.mxu0 0.0
    %565 = vmatpush2.msra.mxu0 0.0
    %566 = vmatprep.subr.mxu0 0.0
    %567 = vmatpush2.msra.mxu0 0.0
    %568 = vmatprep.subr.mxu0 0.0
    %569 = vmatpush2.msra.mxu0 0.0
    %570 = vmatprep.subr.mxu0 0.0
    %571 = vmatpush2.msra.mxu0 0.0
    %572 = vmatprep.subr.mxu0 0.0
    %573 = vmatpush2.msra.mxu0 0.0
    %574 = vmatprep.subr.mxu0 0.0
    %575 = vmatpush2.msra.mxu0 0.0
    %576 = vmatprep.subr.mxu0 0.0
    %577 = vmatpush2.msra.mxu0 0.0
    %578 = vmatprep.subr.mxu0 0.0
    %579 = vmatpush2.msra.mxu0 0.0
    %580 = vmatprep.subr.mxu0 0.0
    %581 = vmatpush2.msra.mxu0 0.0
    %582 = vmatprep.mubr.f32.mxu0 0.0
    %583 = vmatmul.mubr.f32.gmra.mxu0 %v516
    %v584 = vpop.f32.mrf.mxu0
    %v585 = vadd.f32 0.0, %v584
    %v586 = vpop.f32.mrf.mxu0
    %587 = vdwg.mxu0
    %v588 = vadd.f32 %v514, %v585
    %v589 = vxor.u32 %v588, 2147483648
    %v590 = vmul.f32 %v589, 1.442695
    %v591 = vpow.pop %v590
    %v592 = vadd.f32 %v591, 1.0
    %v593 = vrcp.pop %v592
    %v594 = vmul.f32 1.0, %v593
    %s595 = sshll.u32 %s173, 4
    %596 = dma.done %s140, %s595
    %v597 = vld [vmem:[#allocation2 + $0x5] sm:$0x1]
    %v598 = vadd.f32 %v597, %v172
    %v600 = vsel %vm178, %v594, 0
    %602 = vmatprep.subr.mxu0 0.0
    %603 = vmatpush1.msra.mxu0 0.0
    %604 = vmatprep.subr.mxu0 0.0
    %605 = vmatpush1.msra.mxu0 0.0
    %606 = vmatprep.subr.mxu0 0.0
    %607 = vmatpush1.msra.mxu0 0.0
    %608 = vmatprep.subr.mxu0 0.0
    %609 = vmatpush1.msra.mxu0 0.0
    %610 = vmatprep.subr.mxu0 0.0
    %611 = vmatpush1.msra.mxu0 0.0
    %612 = vmatprep.subr.mxu0 0.0
    %613 = vmatpush1.msra.mxu0 0.0
    %614 = vmatprep.subr.mxu0 0.0
    %615 = vmatpush1.msra.mxu0 0.0
    %616 = vmatprep.subr.mxu0 0.0
    %617 = vmatpush1.msra.mxu0 0.0
    %618 = vmatprep.subr.mxu0 0.0
    %619 = vmatpush1.msra.mxu0 0.0
    %620 = vmatprep.subr.mxu0 0.0
    %621 = vmatpush1.msra.mxu0 0.0
    %622 = vmatprep.subr.mxu0 0.0
    %623 = vmatpush1.msra.mxu0 0.0
    %624 = vmatprep.subr.mxu0 0.0
    %625 = vmatpush1.msra.mxu0 0.0
    %626 = vmatprep.subr.mxu0 0.0
    %627 = vmatpush1.msra.mxu0 %v171
    %628 = vmatprep.subr.mxu0 0.0
    %629 = vmatpush1.msra.mxu0 %v170
    %630 = vmatprep.subr.mxu0 0.0
    %631 = vmatpush1.msra.mxu0 %v169
    %632 = vmatprep.subr.mxu0 0.0
    %633 = vmatpush1.msra.mxu0 %v168
    %634 = vmatprep.subr.mxu0 0.0
    %635 = vmatpush2.msra.mxu0 0.0
    %636 = vmatprep.subr.mxu0 0.0
    %637 = vmatpush2.msra.mxu0 0.0
    %638 = vmatprep.subr.mxu0 0.0
    %639 = vmatpush2.msra.mxu0 0.0
    %640 = vmatprep.subr.mxu0 0.0
    %641 = vmatpush2.msra.mxu0 0.0
    %642 = vmatprep.subr.mxu0 0.0
    %643 = vmatpush2.msra.mxu0 0.0
    %644 = vmatprep.subr.mxu0 0.0
    %645 = vmatpush2.msra.mxu0 0.0
    %646 = vmatprep.subr.mxu0 0.0
    %647 = vmatpush2.msra.mxu0 0.0
    %648 = vmatprep.subr.mxu0 0.0
    %649 = vmatpush2.msra.mxu0 0.0
    %650 = vmatprep.subr.mxu0 0.0
    %651 = vmatpush2.msra.mxu0 0.0
    %652 = vmatprep.subr.mxu0 0.0
    %653 = vmatpush2.msra.mxu0 0.0
    %654 = vmatprep.subr.mxu0 0.0
    %655 = vmatpush2.msra.mxu0 0.0
    %656 = vmatprep.subr.mxu0 0.0
    %657 = vmatpush2.msra.mxu0 0.0
    %658 = vmatprep.subr.mxu0 0.0
    %659 = vmatpush2.msra.mxu0 0.0
    %660 = vmatprep.subr.mxu0 0.0
    %661 = vmatpush2.msra.mxu0 0.0
    %662 = vmatprep.subr.mxu0 0.0
    %663 = vmatpush2.msra.mxu0 0.0
    %664 = vmatprep.subr.mxu0 0.0
    %665 = vmatpush2.msra.mxu0 0.0
    %666 = vmatprep.mubr.f32.mxu0 0.0
    %667 = vmatmul.mubr.f32.gmra.mxu0 %v600
    %v668 = vpop.f32.mrf.mxu0
    %v669 = vadd.f32 0.0, %v668
    %v670 = vpop.f32.mrf.mxu0
    %671 = vdwg.mxu0
    %v672 = vadd.f32 %v598, %v669
    %v673 = vxor.u32 %v672, 2147483648
    %v674 = vmul.f32 %v673, 1.442695
    %v675 = vpow.pop %v674
    %v676 = vadd.f32 %v675, 1.0
    %v677 = vrcp.pop %v676
    %v678 = vmul.f32 1.0, %v677
    %s679 = sshll.u32 %s173, 4
    %680 = dma.done %s156, %s679
    %v681 = vld [vmem:[#allocation2 + $0x6] sm:$0x1]
    %v682 = vadd.f32 %v681, %v172
    %v684 = vsel %vm178, %v678, 0
    %686 = vmatprep.subr.mxu0 0.0
    %687 = vmatpush1.msra.mxu0 0.0
    %688 = vmatprep.subr.mxu0 0.0
    %689 = vmatpush1.msra.mxu0 0.0
    %690 = vmatprep.subr.mxu0 0.0
    %691 = vmatpush1.msra.mxu0 0.0
    %692 = vmatprep.subr.mxu0 0.0
    %693 = vmatpush1.msra.mxu0 0.0
    %694 = vmatprep.subr.mxu0 0.0
    %695 = vmatpush1.msra.mxu0 0.0
    %696 = vmatprep.subr.mxu0 0.0
    %697 = vmatpush1.msra.mxu0 0.0
    %698 = vmatprep.subr.mxu0 0.0
    %699 = vmatpush1.msra.mxu0 0.0
    %700 = vmatprep.subr.mxu0 0.0
    %701 = vmatpush1.msra.mxu0 0.0
    %702 = vmatprep.subr.mxu0 0.0
    %703 = vmatpush1.msra.mxu0 0.0
    %704 = vmatprep.subr.mxu0 0.0
    %705 = vmatpush1.msra.mxu0 0.0
    %706 = vmatprep.subr.mxu0 0.0
    %707 = vmatpush1.msra.mxu0 0.0
    %708 = vmatprep.subr.mxu0 0.0
    %709 = vmatpush1.msra.mxu0 0.0
    %710 = vmatprep.subr.mxu0 0.0
    %711 = vmatpush1.msra.mxu0 %v171
    %712 = vmatprep.subr.mxu0 0.0
    %713 = vmatpush1.msra.mxu0 %v170
    %714 = vmatprep.subr.mxu0 0.0
    %715 = vmatpush1.msra.mxu0 %v169
    %716 = vmatprep.subr.mxu0 0.0
    %717 = vmatpush1.msra.mxu0 %v168
    %718 = vmatprep.subr.mxu0 0.0
    %719 = vmatpush2.msra.mxu0 0.0
    %720 = vmatprep.subr.mxu0 0.0
    %721 = vmatpush2.msra.mxu0 0.0
    %722 = vmatprep.subr.mxu0 0.0
    %723 = vmatpush2.msra.mxu0 0.0
    %724 = vmatprep.subr.mxu0 0.0
    %725 = vmatpush2.msra.mxu0 0.0
    %726 = vmatprep.subr.mxu0 0.0
    %727 = vmatpush2.msra.mxu0 0.0
    %728 = vmatprep.subr.mxu0 0.0
    %729 = vmatpush2.msra.mxu0 0.0
    %730 = vmatprep.subr.mxu0 0.0
    %731 = vmatpush2.msra.mxu0 0.0
    %732 = vmatprep.subr.mxu0 0.0
    %733 = vmatpush2.msra.mxu0 0.0
    %734 = vmatprep.subr.mxu0 0.0
    %735 = vmatpush2.msra.mxu0 0.0
    %736 = vmatprep.subr.mxu0 0.0
    %737 = vmatpush2.msra.mxu0 0.0
    %738 = vmatprep.subr.mxu0 0.0
    %739 = vmatpush2.msra.mxu0 0.0
    %740 = vmatprep.subr.mxu0 0.0
    %741 = vmatpush2.msra.mxu0 0.0
    %742 = vmatprep.subr.mxu0 0.0
    %743 = vmatpush2.msra.mxu0 0.0
    %744 = vmatprep.subr.mxu0 0.0
    %745 = vmatpush2.msra.mxu0 0.0
    %746 = vmatprep.subr.mxu0 0.0
    %747 = vmatpush2.msra.mxu0 0.0
    %748 = vmatprep.subr.mxu0 0.0
    %749 = vmatpush2.msra.mxu0 0.0
    %750 = vmatprep.mubr.f32.mxu0 0.0
    %751 = vmatmul.mubr.f32.gmra.mxu0 %v684
    %v752 = vpop.f32.mrf.mxu0
    %v753 = vadd.f32 0.0, %v752
    %v754 = vpop.f32.mrf.mxu0
    %755 = vdwg.mxu0
    %v756 = vadd.f32 %v682, %v753
    %v757 = vxor.u32 %v756, 2147483648
    %v758 = vmul.f32 %v757, 1.442695
    %v759 = vpow.pop %v758
    %v760 = vadd.f32 %v759, 1.0
    %v761 = vrcp.pop %v760
    %v762 = vmul.f32 1.0, %v761
    %v763 = vrot.slane %v342, 7
    %v765 = vrot.slane %v426, 6
    %v767 = vrot.slane %v510, 5
    %v769 = vrot.slane %v594, 4
    %v771 = vrot.slane %v678, 3
    %v774 = vrot.slane %v762, 2
    %vm776 = vcmask 1040384
    %v777 = vsel %vm776, %v258, %v763
    %vm778 = vcmask 1041408
    %v779 = vsel %vm778, %v777, %v765
    %vm780 = vcmask 1042432
    %v781 = vsel %vm780, %v779, %v767
    %vm782 = vcmask 1043456
    %v783 = vsel %vm782, %v781, %v769
    %vm784 = vcmask 1044480
    %v785 = vsel %vm784, %v783, %v771
    %vm786 = vcmask 1045504
    %v787 = vsel %vm786, %v785, %v774
    %v788 = vld [vmem:[#allocation9] sm:$0xff]
    %v789 = vld [vmem:[#allocation9 + $0x8] sm:$0xff]
    %v790 = vld [vmem:[#allocation9 + $0x10] sm:$0xff]
    %v791 = vld [vmem:[#allocation9 + $0x18] sm:$0xff]
    %v793 = vsel %vm178, %v787, 0
    %795 = vmatprep.subr.mxu0 0.0
    %796 = vmatpush1.msra.mxu0 0.0
    %797 = vmatprep.subr.mxu0 0.0
    %798 = vmatpush1.msra.mxu0 0.0
    %799 = vmatprep.subr.mxu0 0.0
    %800 = vmatpush1.msra.mxu0 0.0
    %801 = vmatprep.subr.mxu0 0.0
    %802 = vmatpush1.msra.mxu0 0.0
    %803 = vmatprep.subr.mxu0 0.0
    %804 = vmatpush1.msra.mxu0 0.0
    %805 = vmatprep.subr.mxu0 0.0
    %806 = vmatpush1.msra.mxu0 0.0
    %807 = vmatprep.subr.mxu0 0.0
    %808 = vmatpush1.msra.mxu0 0.0
    %809 = vmatprep.subr.mxu0 0.0
    %810 = vmatpush1.msra.mxu0 0.0
    %811 = vmatprep.subr.mxu0 0.0
    %812 = vmatpush1.msra.mxu0 0.0
    %813 = vmatprep.subr.mxu0 0.0
    %814 = vmatpush1.msra.mxu0 0.0
    %815 = vmatprep.subr.mxu0 0.0
    %816 = vmatpush1.msra.mxu0 0.0
    %817 = vmatprep.subr.mxu0 0.0
    %818 = vmatpush1.msra.mxu0 0.0
    %819 = vmatprep.subr.mxu0 0.0
    %820 = vmatpush1.msra.mxu0 %v791
    %821 = vmatprep.subr.mxu0 0.0
    %822 = vmatpush1.msra.mxu0 %v790
    %823 = vmatprep.subr.mxu0 0.0
    %824 = vmatpush1.msra.mxu0 %v789
    %825 = vmatprep.subr.mxu0 0.0
    %826 = vmatpush1.msra.mxu0 %v788
    %827 = vmatprep.subr.mxu0 0.0
    %828 = vmatpush2.msra.mxu0 0.0
    %829 = vmatprep.subr.mxu0 0.0
    %830 = vmatpush2.msra.mxu0 0.0
    %831 = vmatprep.subr.mxu0 0.0
    %832 = vmatpush2.msra.mxu0 0.0
    %833 = vmatprep.subr.mxu0 0.0
    %834 = vmatpush2.msra.mxu0 0.0
    %835 = vmatprep.subr.mxu0 0.0
    %836 = vmatpush2.msra.mxu0 0.0
    %837 = vmatprep.subr.mxu0 0.0
    %838 = vmatpush2.msra.mxu0 0.0
    %839 = vmatprep.subr.mxu0 0.0
    %840 = vmatpush2.msra.mxu0 0.0
    %841 = vmatprep.subr.mxu0 0.0
    %842 = vmatpush2.msra.mxu0 0.0
    %843 = vmatprep.subr.mxu0 0.0
    %844 = vmatpush2.msra.mxu0 0.0
    %845 = vmatprep.subr.mxu0 0.0
    %846 = vmatpush2.msra.mxu0 0.0
    %847 = vmatprep.subr.mxu0 0.0
    %848 = vmatpush2.msra.mxu0 0.0
    %849 = vmatprep.subr.mxu0 0.0
    %850 = vmatpush2.msra.mxu0 0.0
    %851 = vmatprep.subr.mxu0 0.0
    %852 = vmatpush2.msra.mxu0 0.0
    %853 = vmatprep.subr.mxu0 0.0
    %854 = vmatpush2.msra.mxu0 0.0
    %855 = vmatprep.subr.mxu0 0.0
    %856 = vmatpush2.msra.mxu0 0.0
    %857 = vmatprep.subr.mxu0 0.0
    %858 = vmatpush2.msra.mxu0 0.0
    %859 = vmatprep.mubr.f32.mxu0 0.0
    %860 = vmatmul.mubr.f32.gmra.mxu0 %v793
    %v861 = vpop.f32.mrf.mxu0
    %v862 = vadd.f32 0.0, %v861
    %v863 = vpop.f32.mrf.mxu0
    %864 = vdwg.mxu0
    %vm865 = vcmask 1046528
    %v866 = vsel %vm865, %v862, -inf
    %867 = vmax.xlane.f32.xlu0 %v866
    %v868 = vpop.xlane.xlu0 %867
    %v869 = vsub.f32 %v862, %v868
    %v870 = vmul.f32 %v869, 1.442695
    %v871 = vpow.pop %v870
    %v872 = vlaneseq
    %v873 = vand.u32 %v872, 127
    %vm874 = vcmp.lt.s32.totalorder %v873, 16
    %v875 = vsel %vm874, %v871, 0.0
    %v876 = vsel %vm865, %v875, 0.0
    %877 = vadd.xlane.f32.xlu0 %v876
    %v878 = vpop.xlane.xlu0 %877
    %v879 = vrcp.pop %v878
    %v880 = vmul.f32 %v875, %v879
    %881 = vst [vmem:[#allocation11] sm:$0x7f] %v880
    // Predicated region
    $region58: #{tpu_custom_call.1} parent=1 // pred_check
      _
    $region59: #{tpu_custom_call.1} parent=1 // pred_check_branch
      %883 = sbr.rel (0) target = $region61
    $region60: #{tpu_custom_call.1} parent=1 // pred_region
      %s885 = ssub.s32 128, 128
      %886 = vsyncadd [#allocation6], %s885
      %s888 = sshll.u32 [#allocation11], 4
      %s889 = int_to_ptr.vmem [resolvable:$true] %s888
      %891 = dma.vmem_to_hbm [thread:$0]  %s889, 128, %s5, [#allocation6]
    $region61: #{tpu_custom_call.1} parent=1 // pred_fallthru
      _
    // Predicated region
    $region62: #{tpu_custom_call.1} parent=1 // pred_check
      _
    $region63: #{tpu_custom_call.1} parent=1 // pred_check_branch
      %893 = sbr.rel (0) target = $region65
    $region64: #{tpu_custom_call.1} parent=1 // pred_region
      %894 = dma.done [#allocation6], 128
    $region65: #{tpu_custom_call.1} parent=1 // pred_fallthru
      _
    %895 = vsyncpa [#allocation5], 1
    %896 = vsyncpa [#allocation10], 1
    %897 = vsyncpa [#allocation6], 1
    %898 = vsyncpa [#allocation7], 1
  %899 = vsyncmov [#allocation3]
  %s900 = vpop.sfrf %899
  %p901 = scmp.eq.s32.totalorder %s900, 0
  %p902 = pneg %p901
  %904 = shalt.err (%p902)
  %s905 = scalar_lea.sflag [#allocation3], 1
  %906 = vsyncmov %s905
  %s907 = vpop.sfrf %906
  %p908 = scmp.eq.s32.totalorder %s907, 0
  %p909 = pneg %p908
  %911 = shalt.err (%p909)
  %s912 = scalar_lea.sflag [#allocation3], 2
  %913 = vsyncmov %s912
  %s914 = vpop.sfrf %913
  %p915 = scmp.eq.s32.totalorder %s914, 0
  %p916 = pneg %p915
  %918 = shalt.err (%p916)
  %s919 = scalar_lea.sflag [#allocation3], 3
  %920 = vsyncmov %s919
  %s921 = vpop.sfrf %920
  %p922 = scmp.eq.s32.totalorder %s921, 0
  %p923 = pneg %p922
  %925 = shalt.err (%p923)
  %s926 = scalar_lea.sflag [#allocation3], 4
  %927 = vsyncmov %s926
  %s928 = vpop.sfrf %927
  %p929 = scmp.eq.s32.totalorder %s928, 0
  %p930 = pneg %p929
  %932 = shalt.err (%p930)
  %s933 = scalar_lea.sflag [#allocation3], 5
  %934 = vsyncmov %s933
  %s935 = vpop.sfrf %934
  %p936 = scmp.eq.s32.totalorder %s935, 0
  %p937 = pneg %p936
  %939 = shalt.err (%p937)
  %s940 = scalar_lea.sflag [#allocation3], 6
  %941 = vsyncmov %s940
  %s942 = vpop.sfrf %941
  %p943 = scmp.eq.s32.totalorder %s942, 0
  %p944 = pneg %p943
  %946 = shalt.err (%p944)

</llo_original>
